<compile_context>
chip_gen: v7x
topology: tpu7x:2x2x1
jax: 0.10.0
libtpu: 0.0.40
codegen_flags: <defaults>
</compile_context>

<pallas_src>
import jax
import jax.numpy as jnp
from jax.experimental import pallas as pl
from jax.experimental.pallas import tpu as pltpu


def _round_up(n, m):
    return (n + m - 1) // m * m


def dqn_kernel(xT_ref, w1T_ref, b1_ref, w2T_ref, b2_ref, outT_ref):
    # xT   : (S, TB)  bf16   streamed activation tile (batch on lanes)
    # w1T  : (H, S)   bf16   resident fc1 weight
    # b1   : (H, 1)   f32    resident fc1 bias
    # w2T  : (A, H)   bf16   resident fc2 weight
    # b2   : (A, 1)   f32    resident fc2 bias
    # outT : (A, TB)  f32    lane-dense output tile
    h = jnp.dot(w1T_ref[...], xT_ref[...], preferred_element_type=jnp.float32)
    h = jnp.maximum(h + b1_ref[...], 0.0)                       # f32 bias + ReLU (VPU)
    out = jnp.dot(w2T_ref[...], h.astype(jnp.bfloat16),
                  preferred_element_type=jnp.float32)
    outT_ref[...] = (out + b2_ref[...]).astype(outT_ref.dtype)


def pack_params(w1, b1, w2, b2):
    """Convert math-layout f32 params (w1:(S,H), b1:(H,), w2:(H,A), b2:(A,))
    into the kernel's resident layout (transposed; matmul operands in bf16)."""
    H = w1.shape[1]
    A = w2.shape[1]
    return (w1.T.astype(jnp.bfloat16),                 # (H, S)
            b1.reshape(H, 1).astype(jnp.float32),      # (H, 1)
            w2.T.astype(jnp.bfloat16),                 # (A, H)
            b2.reshape(A, 1).astype(jnp.float32))      # (A, 1)


def dqn_forward(x, w1T, b1, w2T, b2, *, max_tb=512):
    """Fused DQN forward.  x: (B, S) float32.  Returns (B, A) float32.

    The batch tile TB is chosen adaptively: at least 128 (one lane width),
    at most `max_tb`, and no larger than the padded batch so tiny inference
    batches don't pay for padded compute.  Per-step VMEM is
    ~TB*(2*S + 4*A) bytes double-buffered plus ~70 KB of resident weights,
    far below even v7x's 32 MiB scoped default, so no vmem_limit_bytes needed.
    """
    B, S = x.shape
    A = w2T.shape[0]

    tb = min(max_tb, _round_up(max(B, 1), 128))
    B_pad = _round_up(max(B, 1), tb)

    # Pad the batch, put it on the lane axis, and feed the MXU bf16 inputs.
    xT = jnp.pad(x, ((0, B_pad - B), (0, 0))).T.astype(jnp.bfloat16)   # (S, B_pad)

    resident = pl.BlockSpec(memory_space=pltpu.MemorySpace.VMEM)

    outT = pl.pallas_call(
        dqn_kernel,
        out_shape=jax.ShapeDtypeStruct((A, B_pad), jnp.float32),
        grid=(B_pad // tb,),
        in_specs=[
            pl.BlockSpec((S, tb), lambda i: (0, i)),    # streamed activations
            resident, resident, resident, resident,     # weights stay in VMEM
        ],
        out_specs=pl.BlockSpec((A, tb), lambda i: (0, i)),
        compiler_params=pltpu.CompilerParams(
            dimension_semantics=("parallel",)),         # 2 TCs on v7x; no-op v5e/v6e
    )(xT, w1T, b1, w2T, b2)

    return outT.T[:B]                                   # back to (B, A)


def init_params(key, state_size, action_size, hidden=128):
    """PyTorch-default-style Linear init (uniform +/- 1/sqrt(fan_in)), f32,
    math layout: w1 (S,H), b1 (H,), w2 (H,A), b2 (A,)."""
    k1, k2, k3, k4 = jax.random.split(key, 4)
    bound1 = 1.0 / jnp.sqrt(jnp.float32(state_size))
    bound2 = 1.0 / jnp.sqrt(jnp.float32(hidden))
    w1 = jax.random.uniform(k1, (state_size, hidden), jnp.float32, -bound1, bound1)
    b1 = jax.random.uniform(k2, (hidden,), jnp.float32, -bound1, bound1)
    w2 = jax.random.uniform(k3, (hidden, action_size), jnp.float32, -bound2, bound2)
    b2 = jax.random.uniform(k4, (action_size,), jnp.float32, -bound2, bound2)
    return w1, b1, w2, b2


def _reference(x, w1, b1, w2, b2):
    return jnp.maximum(x @ w1 + b1, 0.0) @ w2 + b2


if __name__ == "__main__":
    state_size = 32   # small synthetic state vector
    action_size = 4   # snake: up/down/left/right
    hidden = 128      # matches nn.Linear(state_size, 128)

    key = jax.random.PRNGKey(0)
    kx, kp, kb = jax.random.split(key, 3)
    w1, b1, w2, b2 = init_params(kp, state_size, action_size, hidden)
    packed = pack_params(w1, b1, w2, b2)

    # Small inference-style batch (typical action selection): pads only to 128.
    x_small = jax.random.normal(kx, (2, state_size), jnp.float32)
    out_small = jax.block_until_ready(dqn_forward(x_small, *packed))
    ref_small = _reference(x_small, w1, b1, w2, b2)
    assert out_small.shape == (2, action_size)
    # bf16 matmul inputs with f32 accumulation => ~1e-2-level error vs f32 ref
    assert jnp.allclose(out_small, ref_small, atol=5e-2, rtol=5e-2)

    # Replay-buffer-sized batch: pads to 512 => single wide grid step.
    x_big = jax.random.normal(kb, (500, state_size), jnp.float32)
    out_big = jax.block_until_ready(dqn_forward(x_big, *packed))
    ref_big = _reference(x_big, w1, b1, w2, b2)
    assert out_big.shape == (500, action_size)
    assert jnp.allclose(out_big, ref_big, atol=5e-2, rtol=5e-2)

    # Larger batch exercising multiple grid steps (1024/512 = 2 steps).
    x_multi = jax.random.normal(kp, (1024, state_size), jnp.float32)
    out_multi = jax.block_until_ready(dqn_forward(x_multi, *packed))
    ref_multi = _reference(x_multi, w1, b1, w2, b2)
    assert out_multi.shape == (1024, action_size)
    assert jnp.allclose(out_multi, ref_multi, atol=5e-2, rtol=5e-2)

    print("KERNEL_OK")
</pallas_src>

<mosaic_0001>
module attributes {stable_mosaic.version = 11 : i64} {
  func.func @dqn_kernel(%arg0: i32, %arg1: memref<32x128xbf16, #tpu.memory_space<vmem>>, %arg2: memref<128x32xbf16, #tpu.memory_space<vmem>>, %arg3: memref<128x1xf32, #tpu.memory_space<vmem>>, %arg4: memref<4x128xbf16, #tpu.memory_space<vmem>>, %arg5: memref<4x1xf32, #tpu.memory_space<vmem>>, %arg6: memref<4x128xf32, #tpu.memory_space<vmem>>) attributes {dimension_semantics = [#tpu.dimension_semantics<parallel>], iteration_bounds = array<i64: 1>, scalar_prefetch = 0 : i64, scratch_operands = 0 : i64, tpu.core_type = #tpu.core_type<tc>, window_params = [{transform_indices = @transform_0, window_bounds = array<i64: 32, 128>}, {pipeline_mode = #tpu.pipeline_mode<synchronous>, transform_indices = @transform_1, window_bounds = array<i64: 128, 32>}, {pipeline_mode = #tpu.pipeline_mode<synchronous>, transform_indices = @transform_2, window_bounds = array<i64: 128, 1>}, {pipeline_mode = #tpu.pipeline_mode<synchronous>, transform_indices = @transform_3, window_bounds = array<i64: 4, 128>}, {pipeline_mode = #tpu.pipeline_mode<synchronous>, transform_indices = @transform_4, window_bounds = array<i64: 4, 1>}, {transform_indices = @transform_5, window_bounds = array<i64: 4, 128>}]} {
    %c0 = arith.constant 0 : index
    %c0_0 = arith.constant 0 : index
    %0 = vector.load %arg2[%c0, %c0_0] : memref<128x32xbf16, #tpu.memory_space<vmem>>, vector<128x32xbf16>
    %c0_1 = arith.constant 0 : index
    %c0_2 = arith.constant 0 : index
    %1 = vector.load %arg1[%c0_1, %c0_2] : memref<32x128xbf16, #tpu.memory_space<vmem>>, vector<32x128xbf16>
    %cst = arith.constant dense<0.000000e+00> : vector<128x128xf32>
    %2 = tpu.matmul %0, %1, %cst {dimension_numbers = #tpu.dot_dimension_numbers<[1], [0], [0], [1], [0, 0, 1, 1], [], []>} : vector<128x32xbf16>, vector<32x128xbf16>, vector<128x128xf32> -> vector<128x128xf32>
    %c0_3 = arith.constant 0 : index
    %c0_4 = arith.constant 0 : index
    %3 = vector.load %arg3[%c0_3, %c0_4] : memref<128x1xf32, #tpu.memory_space<vmem>>, vector<128x1xf32>
    %4 = vector.broadcast %3 : vector<128x1xf32> to vector<128x128xf32>
    %5 = arith.addf %2, %4 : vector<128x128xf32>
    %cst_5 = arith.constant 0.000000e+00 : f32
    %6 = vector.broadcast %cst_5 : f32 to vector<128x128xf32>
    %7 = arith.maximumf %5, %6 : vector<128x128xf32>
    %c0_6 = arith.constant 0 : index
    %c0_7 = arith.constant 0 : index
    %8 = vector.load %arg4[%c0_6, %c0_7] : memref<4x128xbf16, #tpu.memory_space<vmem>>, vector<4x128xbf16>
    %9 = arith.truncf %7 : vector<128x128xf32> to vector<128x128xbf16>
    %cst_8 = arith.constant dense<0.000000e+00> : vector<4x128xf32>
    %10 = tpu.matmul %8, %9, %cst_8 {dimension_numbers = #tpu.dot_dimension_numbers<[1], [0], [0], [1], [0, 0, 1, 1], [], []>} : vector<4x128xbf16>, vector<128x128xbf16>, vector<4x128xf32> -> vector<4x128xf32>
    %c0_9 = arith.constant 0 : index
    %c0_10 = arith.constant 0 : index
    %11 = vector.load %arg5[%c0_9, %c0_10] : memref<4x1xf32, #tpu.memory_space<vmem>>, vector<4x1xf32>
    %12 = vector.broadcast %11 : vector<4x1xf32> to vector<4x128xf32>
    %13 = arith.addf %10, %12 : vector<4x128xf32>
    %c0_11 = arith.constant 0 : index
    %c0_12 = arith.constant 0 : index
    %14 = vector.load %arg6[%c0_11, %c0_12] : memref<4x128xf32, #tpu.memory_space<vmem>>, vector<4x128xf32>
    tpu.vector_store %arg6[%c0_11, %c0_12], %13 {strides = array<i32>} : memref<4x128xf32, #tpu.memory_space<vmem>>, vector<4x128xf32>,
    return
  }
  func.func @transform_0(%arg0: i32) -> (i32, i32) {
    %c0_i32 = arith.constant 0 : i32
    %c0_i32_0 = arith.constant 0 : i32
    return %c0_i32, %arg0 : i32, i32
  }
  func.func @transform_1(%arg0: i32) -> (i32, i32) {
    %c0_i32 = arith.constant 0 : i32
    %c0_i32_0 = arith.constant 0 : i32
    %c0_i32_1 = arith.constant 0 : i32
    return %c0_i32, %c0_i32_0 : i32, i32
  }
  func.func @transform_2(%arg0: i32) -> (i32, i32) {
    %c0_i32 = arith.constant 0 : i32
    %c0_i32_0 = arith.constant 0 : i32
    %c0_i32_1 = arith.constant 0 : i32
    return %c0_i32, %c0_i32_0 : i32, i32
  }
  func.func @transform_3(%arg0: i32) -> (i32, i32) {
    %c0_i32 = arith.constant 0 : i32
    %c0_i32_0 = arith.constant 0 : i32
    %c0_i32_1 = arith.constant 0 : i32
    return %c0_i32, %c0_i32_0 : i32, i32
  }
  func.func @transform_4(%arg0: i32) -> (i32, i32) {
    %c0_i32 = arith.constant 0 : i32
    %c0_i32_0 = arith.constant 0 : i32
    %c0_i32_1 = arith.constant 0 : i32
    return %c0_i32, %c0_i32_0 : i32, i32
  }
  func.func @transform_5(%arg0: i32) -> (i32, i32) {
    %c0_i32 = arith.constant 0 : i32
    %c0_i32_0 = arith.constant 0 : i32
    return %c0_i32, %arg0 : i32, i32
  }
}

</mosaic_0001>

<llo_original>
// kernel: tpu_custom_call.1
$region0: #{tpu_custom_call.1}
  #allocation0 [shape = 'u32[]', space=smem, size = 0x4, offset = 0x4, fixed_abs, tag = 'smem constant byte address 0x4 - core index']
  #allocation1 [shape = 'u32[144,128]{1,0:T(1,128)}', space=vmem, size = 0x12000, scoped, tag = 'internal scratch']
  %s0 = inlined_call_operand.vmem [shape: bf16[32,128], index: 0, kind: input, shape index: {}]
  %s1 = inlined_call_operand.vmem [shape: bf16[128,32], index: 1, kind: input, shape index: {}]
  %s2 = inlined_call_operand.vmem [shape: f32[128,1], index: 2, kind: input, shape index: {}]
  %s3 = inlined_call_operand.vmem [shape: bf16[4,128], index: 3, kind: input, shape index: {}]
  %s4 = inlined_call_operand.vmem [shape: f32[4,1], index: 4, kind: input, shape index: {}]
  %s5 = inlined_call_operand.hbm [shape: f32[4,128], index: 5, kind: output, shape index: {}]
  %s6 = sld [smem:[#allocation0]]
  $region30: #{tpu_custom_call.1} parent=0
    _
  %s8 = ssub.s32 1, %s6
  %s9 = scalar_select 0, %s8, %s6
  $region1: #{tpu_custom_call.1} parent=0
    #allocation2 [shape = 'u8[2048]{0}', space=vmem, size = 0x800, scoped, tag = 'output window, operand 0, single buffered']
    #allocation3 [shape = 's32[1]{0}', space=sflag, size = 0x4, scoped, tag = 'scoped memory for tpu_custom_call.1']
    %10 = vsyncpa [#allocation3], 0
    // Predicated region
    $region2: #{tpu_custom_call.1} parent=1 // pred_check
      _
    $region3: #{tpu_custom_call.1} parent=1 // pred_check_branch
      %12 = sbr.rel (0) target = $region5
    $region4: #{tpu_custom_call.1} parent=1 // pred_region
      _
    $region5: #{tpu_custom_call.1} parent=1 // pred_fallthru
      _
    // Predicated region
    $region6: #{tpu_custom_call.1} parent=1 // pred_check
      _
    $region7: #{tpu_custom_call.1} parent=1 // pred_check_branch
      %14 = sbr.rel (0) target = $region9
    $region8: #{tpu_custom_call.1} parent=1 // pred_region
      _
    $region9: #{tpu_custom_call.1} parent=1 // pred_fallthru
      _
    // Predicated region
    $region10: #{tpu_custom_call.1} parent=1 // pred_check
      _
    $region11: #{tpu_custom_call.1} parent=1 // pred_check_branch
      %16 = sbr.rel (0) target = $region13
    $region12: #{tpu_custom_call.1} parent=1 // pred_region
      _
    $region13: #{tpu_custom_call.1} parent=1 // pred_fallthru
      _
    // Predicated region
    $region14: #{tpu_custom_call.1} parent=1 // pred_check
      _
    $region15: #{tpu_custom_call.1} parent=1 // pred_check_branch
      %18 = sbr.rel (0) target = $region17
    $region16: #{tpu_custom_call.1} parent=1 // pred_region
      _
    $region17: #{tpu_custom_call.1} parent=1 // pred_fallthru
      _
    // Predicated region
    $region18: #{tpu_custom_call.1} parent=1 // pred_check
      _
    $region19: #{tpu_custom_call.1} parent=1 // pred_check_branch
      %20 = sbr.rel (0) target = $region21
    $region20: #{tpu_custom_call.1} parent=1 // pred_region
      _
    $region21: #{tpu_custom_call.1} parent=1 // pred_fallthru
      _
    %v22 = vld [vmem:[%s1] sm:$0xf]
    %v23 = vld [vmem:[%s1 + $0x4] sm:$0xf]
    %v24 = vld [vmem:[%s1 + $0x8] sm:$0xf]
    %v25 = vld [vmem:[%s1 + $0xc] sm:$0xf]
    %v26 = vld [vmem:[%s1 + $0x10] sm:$0xf]
    %v27 = vld [vmem:[%s1 + $0x14] sm:$0xf]
    %v28 = vld [vmem:[%s1 + $0x18] sm:$0xf]
    %v29 = vld [vmem:[%s1 + $0x1c] sm:$0xf]
    %v30 = vld [vmem:[%s1 + $0x20] sm:$0xf]
    %v31 = vld [vmem:[%s1 + $0x24] sm:$0xf]
    %v32 = vld [vmem:[%s1 + $0x28] sm:$0xf]
    %v33 = vld [vmem:[%s1 + $0x2c] sm:$0xf]
    %v34 = vld [vmem:[%s1 + $0x30] sm:$0xf]
    %v35 = vld [vmem:[%s1 + $0x34] sm:$0xf]
    %v36 = vld [vmem:[%s1 + $0x38] sm:$0xf]
    %v37 = vld [vmem:[%s1 + $0x3c] sm:$0xf]
    %v38 = vld [vmem:[%s0] sm:$0xf]
    %v39 = vld [vmem:[%s0 + $0x4] sm:$0xf]
    %v40 = vld [vmem:[%s0 + $0x8] sm:$0xf]
    %v41 = vld [vmem:[%s0 + $0xc] sm:$0xf]
    %v42 = vld [vmem:[%s2] sm:$0xff]
    %v43 = vld [vmem:[%s2 + $0x8] sm:$0xff]
    %v44 = vld [vmem:[%s2 + $0x10] sm:$0xff]
    %v45 = vld [vmem:[%s2 + $0x18] sm:$0xff]
    %v46 = vld [vmem:[%s2 + $0x20] sm:$0xff]
    %v47 = vld [vmem:[%s2 + $0x28] sm:$0xff]
    %v48 = vld [vmem:[%s2 + $0x30] sm:$0xff]
    %v49 = vld [vmem:[%s2 + $0x38] sm:$0xff]
    %v50 = vld [vmem:[%s2 + $0x40] sm:$0xff]
    %v51 = vld [vmem:[%s2 + $0x48] sm:$0xff]
    %v52 = vld [vmem:[%s2 + $0x50] sm:$0xff]
    %v53 = vld [vmem:[%s2 + $0x58] sm:$0xff]
    %v54 = vld [vmem:[%s2 + $0x60] sm:$0xff]
    %v55 = vld [vmem:[%s2 + $0x68] sm:$0xff]
    %v56 = vld [vmem:[%s2 + $0x70] sm:$0xff]
    %v57 = vld [vmem:[%s2 + $0x78] sm:$0xff]
    %59 = vset.pattern.permute.xlu0 0
    %60 = vperm.xlu0 %59, %v42
    %v61 = vpop.permute.xlu0 %60
    %64 = vset.pattern.permute.xlu0 0
    %65 = vperm.xlu0 %64, %v43
    %v66 = vpop.permute.xlu0 %65
    %69 = vset.pattern.permute.xlu0 0
    %70 = vperm.xlu0 %69, %v44
    %v71 = vpop.permute.xlu0 %70
    %74 = vset.pattern.permute.xlu0 0
    %75 = vperm.xlu0 %74, %v45
    %v76 = vpop.permute.xlu0 %75
    %79 = vset.pattern.permute.xlu0 0
    %80 = vperm.xlu0 %79, %v46
    %v81 = vpop.permute.xlu0 %80
    %84 = vset.pattern.permute.xlu0 0
    %85 = vperm.xlu0 %84, %v47
    %v86 = vpop.permute.xlu0 %85
    %89 = vset.pattern.permute.xlu0 0
    %90 = vperm.xlu0 %89, %v48
    %v91 = vpop.permute.xlu0 %90
    %94 = vset.pattern.permute.xlu0 0
    %95 = vperm.xlu0 %94, %v49
    %v96 = vpop.permute.xlu0 %95
    %99 = vset.pattern.permute.xlu0 0
    %100 = vperm.xlu0 %99, %v50
    %v101 = vpop.permute.xlu0 %100
    %104 = vset.pattern.permute.xlu0 0
    %105 = vperm.xlu0 %104, %v51
    %v106 = vpop.permute.xlu0 %105
    %109 = vset.pattern.permute.xlu0 0
    %110 = vperm.xlu0 %109, %v52
    %v111 = vpop.permute.xlu0 %110
    %114 = vset.pattern.permute.xlu0 0
    %115 = vperm.xlu0 %114, %v53
    %v116 = vpop.permute.xlu0 %115
    %119 = vset.pattern.permute.xlu0 0
    %120 = vperm.xlu0 %119, %v54
    %v121 = vpop.permute.xlu0 %120
    %124 = vset.pattern.permute.xlu0 0
    %125 = vperm.xlu0 %124, %v55
    %v126 = vpop.permute.xlu0 %125
    %129 = vset.pattern.permute.xlu0 0
    %130 = vperm.xlu0 %129, %v56
    %v131 = vpop.permute.xlu0 %130
    %134 = vset.pattern.permute.xlu0 0
    %135 = vperm.xlu0 %134, %v57
    %v136 = vpop.permute.xlu0 %135
    %v154 = vunpack.c.l.b16 %v22
    %v155 = vunpack.c.l.b16 %v23
    %v156 = vunpack.c.l.b16 %v24
    %v157 = vunpack.c.l.b16 %v25
    %v158 = vunpack.c.l.b16 %v26
    %v159 = vunpack.c.l.b16 %v27
    %v160 = vunpack.c.l.b16 %v28
    %v161 = vunpack.c.l.b16 %v29
    %v162 = vunpack.c.l.b16 %v30
    %v163 = vunpack.c.l.b16 %v31
    %v164 = vunpack.c.l.b16 %v32
    %v165 = vunpack.c.l.b16 %v33
    %v166 = vunpack.c.l.b16 %v34
    %v167 = vunpack.c.l.b16 %v35
    %v168 = vunpack.c.l.b16 %v36
    %v169 = vunpack.c.l.b16 %v37
    %v170 = vpack.c.b16 %v155, %v154
    %v171 = vpack.c.b16 %v157, %v156
    %v172 = vpack.c.b16 %v159, %v158
    %v173 = vpack.c.b16 %v161, %v160
    %v174 = vpack.c.b16 %v163, %v162
    %v175 = vpack.c.b16 %v165, %v164
    %v176 = vpack.c.b16 %v167, %v166
    %v177 = vpack.c.b16 %v169, %v168
    %v182 = vunpack.c.l.b16 %v38
    %v183 = vunpack.c.l.b16 %v39
    %v184 = vunpack.c.l.b16 %v40
    %v185 = vunpack.c.l.b16 %v41
    %v186 = vpack.c.b16 %v183, %v182
    %v187 = vpack.c.b16 %v185, %v184
    %vm190 = vcmask 261120
    %v192 = vsel %vm190, %v170, 0
    %v195 = vsel %vm190, %v171, 0
    %v198 = vsel %vm190, %v172, 0
    %v201 = vsel %vm190, %v173, 0
    %v204 = vsel %vm190, %v174, 0
    %v207 = vsel %vm190, %v175, 0
    %v210 = vsel %vm190, %v176, 0
    %v213 = vsel %vm190, %v177, 0
    %215 = vmatprep.subr.bf16.mxu0 0
    %216 = vmatpush1.bf16.msra.mxu0 %v186
    %217 = vmatprep.subr.bf16.mxu0 0
    %218 = vmatpush1.bf16.msra.mxu0 %v187
    %219 = vmatprep.subr.bf16.mxu0 0
    %220 = vmatpush1.bf16.msra.mxu0 0
    %221 = vmatprep.subr.bf16.mxu0 0
    %222 = vmatpush1.bf16.msra.mxu0 0
    %223 = vmatprep.subr.bf16.mxu0 0
    %224 = vmatpush1.bf16.msra.mxu0 0
    %225 = vmatprep.subr.bf16.mxu0 0
    %226 = vmatpush1.bf16.msra.mxu0 0
    %227 = vmatprep.subr.bf16.mxu0 0
    %228 = vmatpush1.bf16.msra.mxu0 0
    %229 = vmatprep.subr.bf16.mxu0 0
    %230 = vmatpush1.bf16.msra.mxu0 0
    %231 = vmatprep.subr.bf16.mxu0 0
    %232 = vmatpush1.bf16.msra.mxu0 0
    %233 = vmatprep.subr.bf16.mxu0 0
    %234 = vmatpush1.bf16.msra.mxu0 0
    %235 = vmatprep.subr.bf16.mxu0 0
    %236 = vmatpush1.bf16.msra.mxu0 0
    %237 = vmatprep.subr.bf16.mxu0 0
    %238 = vmatpush1.bf16.msra.mxu0 0
    %239 = vmatprep.subr.bf16.mxu0 0
    %240 = vmatpush1.bf16.msra.mxu0 0
    %241 = vmatprep.subr.bf16.mxu0 0
    %242 = vmatpush1.bf16.msra.mxu0 0
    %243 = vmatprep.subr.bf16.mxu0 0
    %244 = vmatpush1.bf16.msra.mxu0 0
    %245 = vmatprep.subr.bf16.mxu0 0
    %246 = vmatpush1.bf16.msra.mxu0 0
    %247 = vmatprep.mubr.bf16.mxu0 0
    %248 = vmatmul.mubr.bf16.gmra.mrb[0].mxu0 %v192
    %v249 = vpop.f32.mrb[0].mxu0
    %v250 = vadd.f32 %v61, %v249
    %v251 = vpop.f32.mrb[0].mxu0
    %v252 = vpop.f32.mrb[0].mxu0
    %v253 = vadd.f32 %v66, %v252
    %v254 = vpop.f32.mrb[0].mxu0
    %255 = vmatprep.mubr.bf16.mxu0 0
    %256 = vmatmul.mubr.bf16.gmra.mrb[0].mxu0 %v195
    %v257 = vpop.f32.mrb[0].mxu0
    %v258 = vadd.f32 %v71, %v257
    %v259 = vpop.f32.mrb[0].mxu0
    %v260 = vpop.f32.mrb[0].mxu0
    %v261 = vadd.f32 %v76, %v260
    %v262 = vpop.f32.mrb[0].mxu0
    %263 = vmatprep.mubr.bf16.mxu0 0
    %264 = vmatmul.mubr.bf16.gmra.mrb[0].mxu0 %v198
    %v265 = vpop.f32.mrb[0].mxu0
    %v266 = vadd.f32 %v81, %v265
    %v267 = vpop.f32.mrb[0].mxu0
    %v268 = vpop.f32.mrb[0].mxu0
    %v269 = vadd.f32 %v86, %v268
    %v270 = vpop.f32.mrb[0].mxu0
    %271 = vmatprep.mubr.bf16.mxu0 0
    %272 = vmatmul.mubr.bf16.gmra.mrb[0].mxu0 %v201
    %v273 = vpop.f32.mrb[0].mxu0
    %v274 = vadd.f32 %v91, %v273
    %v275 = vpop.f32.mrb[0].mxu0
    %v276 = vpop.f32.mrb[0].mxu0
    %v277 = vadd.f32 %v96, %v276
    %v278 = vpop.f32.mrb[0].mxu0
    %279 = vmatprep.mubr.bf16.mxu0 0
    %280 = vmatmul.mubr.bf16.gmra.mrb[0].mxu0 %v204
    %v281 = vpop.f32.mrb[0].mxu0
    %v282 = vadd.f32 %v101, %v281
    %v283 = vpop.f32.mrb[0].mxu0
    %v284 = vpop.f32.mrb[0].mxu0
    %v285 = vadd.f32 %v106, %v284
    %v286 = vpop.f32.mrb[0].mxu0
    %287 = vmatprep.mubr.bf16.mxu0 0
    %288 = vmatmul.mubr.bf16.gmra.mrb[0].mxu0 %v207
    %v289 = vpop.f32.mrb[0].mxu0
    %v290 = vadd.f32 %v111, %v289
    %v291 = vpop.f32.mrb[0].mxu0
    %v292 = vpop.f32.mrb[0].mxu0
    %v293 = vadd.f32 %v116, %v292
    %v294 = vpop.f32.mrb[0].mxu0
    %295 = vmatprep.mubr.bf16.mxu0 0
    %296 = vmatmul.mubr.bf16.gmra.mrb[0].mxu0 %v210
    %v297 = vpop.f32.mrb[0].mxu0
    %v298 = vadd.f32 %v121, %v297
    %v299 = vpop.f32.mrb[0].mxu0
    %v300 = vpop.f32.mrb[0].mxu0
    %v301 = vadd.f32 %v126, %v300
    %v302 = vpop.f32.mrb[0].mxu0
    %303 = vmatprep.mubr.bf16.mxu0 0
    %304 = vmatmul.mubr.bf16.gmra.mrb[0].mxu0 %v213
    %v305 = vpop.f32.mrb[0].mxu0
    %v306 = vadd.f32 %v131, %v305
    %v307 = vpop.f32.mrb[0].mxu0
    %v308 = vpop.f32.mrb[0].mxu0
    %v309 = vadd.f32 %v136, %v308
    %v310 = vpop.f32.mrb[0].mxu0
    %311 = vdwg.mxu0
    %v312 = vmax.f32 %v250, 0.0
    %v313 = vmax.f32 %v253, 0.0
    %v314 = vmax.f32 %v258, 0.0
    %v315 = vmax.f32 %v261, 0.0
    %v316 = vmax.f32 %v266, 0.0
    %v317 = vmax.f32 %v269, 0.0
    %v318 = vmax.f32 %v274, 0.0
    %v319 = vmax.f32 %v277, 0.0
    %v320 = vmax.f32 %v282, 0.0
    %v321 = vmax.f32 %v285, 0.0
    %v322 = vmax.f32 %v290, 0.0
    %v323 = vmax.f32 %v293, 0.0
    %v324 = vmax.f32 %v298, 0.0
    %v325 = vmax.f32 %v301, 0.0
    %v326 = vmax.f32 %v306, 0.0
    %v327 = vmax.f32 %v309, 0.0
    %v328 = vld [vmem:[%s3] sm:$0x3]
    %v329 = vpack.c.bf16 %v313, %v312
    %v330 = vpack.c.bf16 %v315, %v314
    %v331 = vpack.c.bf16 %v317, %v316
    %v332 = vpack.c.bf16 %v319, %v318
    %v333 = vpack.c.bf16 %v321, %v320
    %v334 = vpack.c.bf16 %v323, %v322
    %v335 = vpack.c.bf16 %v325, %v324
    %v336 = vpack.c.bf16 %v327, %v326
    %v337 = vld [vmem:[%s4] sm:$0xf]
    %339 = vset.pattern.permute.xlu0 0
    %340 = vperm.xlu0 %339, %v337
    %v341 = vpop.permute.xlu0 %340
    %343 = vmatprep.subr.bf16.mxu0 0
    %344 = vmatpush1.bf16.msra.mxu0 %v329
    %345 = vmatprep.subr.bf16.mxu0 0
    %346 = vmatpush1.bf16.msra.mxu0 %v330
    %347 = vmatprep.subr.bf16.mxu0 0
    %348 = vmatpush1.bf16.msra.mxu0 %v331
    %349 = vmatprep.subr.bf16.mxu0 0
    %350 = vmatpush1.bf16.msra.mxu0 %v332
    %351 = vmatprep.subr.bf16.mxu0 0
    %352 = vmatpush1.bf16.msra.mxu0 %v333
    %353 = vmatprep.subr.bf16.mxu0 0
    %354 = vmatpush1.bf16.msra.mxu0 %v334
    %355 = vmatprep.subr.bf16.mxu0 0
    %356 = vmatpush1.bf16.msra.mxu0 %v335
    %357 = vmatprep.subr.bf16.mxu0 0
    %358 = vmatpush1.bf16.msra.mxu0 %v336
    %359 = vmatprep.subr.bf16.mxu0 0
    %360 = vmatpush1.bf16.msra.mxu0 0
    %361 = vmatprep.subr.bf16.mxu0 0
    %362 = vmatpush1.bf16.msra.mxu0 0
    %363 = vmatprep.subr.bf16.mxu0 0
    %364 = vmatpush1.bf16.msra.mxu0 0
    %365 = vmatprep.subr.bf16.mxu0 0
    %366 = vmatpush1.bf16.msra.mxu0 0
    %367 = vmatprep.subr.bf16.mxu0 0
    %368 = vmatpush1.bf16.msra.mxu0 0
    %369 = vmatprep.subr.bf16.mxu0 0
    %370 = vmatpush1.bf16.msra.mxu0 0
    %371 = vmatprep.subr.bf16.mxu0 0
    %372 = vmatpush1.bf16.msra.mxu0 0
    %373 = vmatprep.subr.bf16.mxu0 0
    %374 = vmatpush1.bf16.msra.mxu0 0
    %375 = vmatprep.mubr.bf16.mxu0 0
    %376 = vmatmul.mubr.bf16.gmra.mrb[0].mxu0 %v328
    %v377 = vpop.f32.mrb[0].mxu0
    %v378 = vadd.f32 %v341, %v377
    %v379 = vpop.f32.mrb[0].mxu0
    %v380 = vpop.f32.mrb[0].mxu0
    %v381 = vpop.f32.mrb[0].mxu0
    %382 = vdwg.mxu0
    %383 = vst [vmem:[#allocation2] sm:$0xf] %v378
    // Predicated region
    $region22: #{tpu_custom_call.1} parent=1 // pred_check
      _
    $region23: #{tpu_custom_call.1} parent=1 // pred_check_branch
      %385 = sbr.rel (0) target = $region25
    $region24: #{tpu_custom_call.1} parent=1 // pred_region
      %s387 = ssub.s32 64, 64
      %388 = vsyncadd [#allocation3], %s387
      %s390 = sshll.u32 [#allocation2], 4
      %s391 = int_to_ptr.vmem [resolvable:$true] %s390
      %393 = dma.vmem_to_hbm [thread:$0]  %s391, 64, %s5, [#allocation3]
    $region25: #{tpu_custom_call.1} parent=1 // pred_fallthru
      _
    // Predicated region
    $region26: #{tpu_custom_call.1} parent=1 // pred_check
      _
    $region27: #{tpu_custom_call.1} parent=1 // pred_check_branch
      %395 = sbr.rel (0) target = $region29
    $region28: #{tpu_custom_call.1} parent=1 // pred_region
      %396 = dma.done [#allocation3], 64
    $region29: #{tpu_custom_call.1} parent=1 // pred_fallthru
      _
    %397 = vsyncpa [#allocation3], 1

</llo_original>
